<compile_context>
chip_gen: v5e
topology: v5e:2x2
jax: 0.10.0
libtpu: 0.0.40
codegen_flags: <defaults>
</compile_context>

<pallas_src>
import functools

import jax
import jax.numpy as jnp
from jax.experimental import pallas as pl
from jax.experimental.pallas import tpu as pltpu

LANES = 128


def _surface_loss_kernel(yp_ref, dm_ref, out_ref, acc_ref, *,
                         tr, acc_rows, num_blocks, bps,
                         valid_rows_last, needs_mask, padded):
    c = pl.program_id(0)   # core-split axis (CORE_PARALLEL on v7x, size 1 elsewhere)
    i = pl.program_id(1)   # reduction-step axis ("arbitrary")

    @pl.when(i == 0)
    def _init():
        acc_ref[...] = jnp.zeros_like(acc_ref)

    prod = yp_ref[...].astype(jnp.float32) * dm_ref[...].astype(jnp.float32)

    def _reduce_into_acc(x):
        # Chunked VALU accumulate into a small resident accumulator:
        # (tr,128) -> (tr/acc_rows, acc_rows, 128) summed over the leading axis.
        # No per-step XLU reduce; the one full reduce is in the epilogue.
        acc_ref[...] += x.reshape(-1, acc_rows, LANES).sum(axis=0)

    def _acc_full():
        _reduce_into_acc(prod)

    def _acc_masked():
        row_ids = jax.lax.broadcasted_iota(jnp.int32, prod.shape, 0)
        _reduce_into_acc(jnp.where(row_ids < valid_rows_last, prod, 0.0))

    gb = c * bps + i   # global block index

    def _step():
        if needs_mask:   # static: only the last block is partial
            pl.when(gb == num_blocks - 1)(_acc_masked)
            pl.when(gb != num_blocks - 1)(_acc_full)
        else:
            _acc_full()

    if padded:           # static: uneven 2-way split -> skip out-of-range steps
        pl.when(gb < num_blocks)(_step)
    else:
        _step()

    @pl.when(i == pl.num_programs(1) - 1)
    def _finalize():
        # Single cross-lane/sublane reduce per split, into the SMEM output.
        out_ref[0, 0] = jnp.sum(acc_ref[...])


def _core_split():
    """(splits, semantics) for the leading grid axis: 2-way CORE_PARALLEL on v7x."""
    try:
        kind = jax.devices()[0].device_kind.lower()
    except Exception:
        kind = ""
    if "v7" in kind:
        return 2, pltpu.CORE_PARALLEL
    return 1, pltpu.ARBITRARY


def surface_loss(y_pred, dis_map, *, tile_rows=8192):
    """Equivalent of torch.mean(torch.mul(y_pred, dis_map))."""
    assert y_pred.shape == dis_map.shape
    n = int(y_pred.size)

    yp_flat = y_pred.reshape(-1)   # contiguous reshape: no copy
    dm_flat = dis_map.reshape(-1)

    # Main region = largest multiple of 128 lanes; the (<128 elem) ragged tail
    # is summed in plain JAX.
    n_main = (n // LANES) * LANES
    tail_sum = jnp.float32(0.0)
    if n_main < n:
        tail_sum = jnp.sum(yp_flat[n_main:].astype(jnp.float32)
                           * dm_flat[n_main:].astype(jnp.float32))
    if n_main == 0:
        return tail_sum / jnp.float32(n)

    if n_main == n:
        yp_main, dm_main = yp_flat, dm_flat
    else:
        # TODO(synk): this XLA slice feeding the pallas_call materializes a
        # near-full HBM copy of both inputs when n % 128 != 0; a 1-D
        # globally-index-masked kernel (or allow_input_fusion) would remove it.
        yp_main, dm_main = yp_flat[:n_main], dm_flat[:n_main]

    rows = n_main // LANES
    yp2 = yp_main.reshape(rows, LANES)
    dm2 = dm_main.reshape(rows, LANES)

    # --- tiling --------------------------------------------------------------
    # Block rows: multiple of 64 (sublane-packing safe for f32/bf16/int8), or a
    # single full-extent block when everything fits one step.
    tile_cap = max(64, (int(tile_rows) // 64) * 64)
    if rows <= tile_cap:
        tr, num_blocks, needs_mask = rows, 1, False
    else:
        tr = tile_cap
        num_blocks = -(-rows // tr)
        needs_mask = (rows % tr) != 0
    valid_rows_last = rows - (num_blocks - 1) * tr

    acc_rows = tr
    for cand in (64, 32, 16, 8):
        if tr % cand == 0:
            acc_rows = cand
            break

    # --- optional 2-way core split (v7x only) --------------------------------
    splits, split_sem = (1, pltpu.ARBITRARY)
    if num_blocks >= 2:
        splits, split_sem = _core_split()
    bps = -(-num_blocks // splits)
    padded = (splits * bps) != num_blocks

    if padded:
        in_map = lambda c, i: (jnp.minimum(c * bps + i, num_blocks - 1), 0)
    else:
        in_map = lambda c, i: (c * bps + i, 0)

    itemsize = yp2.dtype.itemsize
    vmem_need = (4 * tr * LANES * itemsize      # 2 inputs x double buffer
                 + 3 * tr * LANES * 4           # f32 temporaries (prod / mask / select)
                 + acc_rows * LANES * 4
                 + (2 << 20))                   # headroom
    vmem_limit = int(min(max(vmem_need, 40 << 20), 56 << 20))

    kernel = functools.partial(
        _surface_loss_kernel,
        tr=tr, acc_rows=acc_rows, num_blocks=num_blocks, bps=bps,
        valid_rows_last=valid_rows_last, needs_mask=needs_mask, padded=padded)

    partials = pl.pallas_call(
        kernel,
        out_shape=jax.ShapeDtypeStruct((splits, 1), jnp.float32),
        grid_spec=pltpu.PrefetchScalarGridSpec(
            num_scalar_prefetch=0,
            grid=(splits, bps),
            in_specs=[
                pl.BlockSpec((tr, LANES), in_map),
                pl.BlockSpec((tr, LANES), in_map),
            ],
            out_specs=pl.BlockSpec((1, 1), lambda c, i: (c, 0),
                                   memory_space=pltpu.SMEM),
            scratch_shapes=[pltpu.VMEM((acc_rows, LANES), jnp.float32)],
        ),
        compiler_params=pltpu.CompilerParams(
            dimension_semantics=(split_sem, pltpu.ARBITRARY),
            vmem_limit_bytes=vmem_limit,
        ),
        cost_estimate=pl.CostEstimate(
            flops=2 * n_main,
            transcendentals=0,
            bytes_accessed=2 * n_main * itemsize + 4 * splits),
    )(yp2, dm2)

    total = jnp.sum(partials) + tail_sum
    return total / jnp.float32(n)


if __name__ == "__main__":
    key = jax.random.PRNGKey(0)
    k = jax.random.split(key, 8)

    def check(yp, dm, **kw):
        loss = surface_loss(yp, dm, **kw)
        jax.block_until_ready(loss)
        ref = jnp.mean(yp * dm)
        assert jnp.allclose(loss, ref, rtol=1e-5, atol=1e-6), (loss, ref)

    # 1) Primary NCHW shape: single full-extent block fast path.
    check(jax.random.uniform(k[0], (2, 4, 16, 16), dtype=jnp.float32),
          jax.random.normal(k[1], (2, 4, 16, 16), dtype=jnp.float32))

    # 2) Multi-block accumulation (small tile to exercise the grid; even split).
    check(jax.random.uniform(k[2], (2, 4, 64, 64), dtype=jnp.float32),
          jax.random.normal(k[3], (2, 4, 64, 64), dtype=jnp.float32),
          tile_rows=64)

    # 3) Masked partial last block + odd block count (padded core split on v7x).
    check(jax.random.uniform(k[4], (2, 4, 40, 64), dtype=jnp.float32),
          jax.random.normal(k[5], (2, 4, 40, 64), dtype=jnp.float32),
          tile_rows=64)

    # 4) Ragged element count: full-extent block + plain-JAX tail.
    check(jax.random.uniform(k[6], (2, 3, 33, 17), dtype=jnp.float32),
          jax.random.normal(k[7], (2, 3, 33, 17), dtype=jnp.float32))

    print("KERNEL_OK")
</pallas_src>

<mosaic_0001>
module attributes {stable_mosaic.version = 11 : i64} {
  func.func @_surface_loss_kernel(%arg0: i32, %arg1: i32, %arg2: memref<16x128xf32, #tpu.memory_space<vmem>>, %arg3: memref<16x128xf32, #tpu.memory_space<vmem>>, %arg4: memref<1x1xf32, #tpu.memory_space<smem>>, %arg5: memref<16x128xf32, #tpu.memory_space<vmem>>) attributes {dimension_semantics = [#tpu.dimension_semantics<arbitrary>, #tpu.dimension_semantics<arbitrary>], iteration_bounds = array<i64: 1, 1>, scalar_prefetch = 0 : i64, scratch_operands = 1 : i64, tpu.core_type = #tpu.core_type<tc>, window_params = [{transform_indices = @transform_0, window_bounds = array<i64: 16, 128>}, {transform_indices = @transform_1, window_bounds = array<i64: 16, 128>}, {transform_indices = @transform_2, window_bounds = array<i64: 1, 1>}]} {
    %c0_i32 = arith.constant 0 : i32
    %0 = arith.cmpi eq, %arg1, %c0_i32 : i32
    %1 = arith.extui %0 : i1 to i32
    %c0_i32_0 = arith.constant 0 : i32
    %2 = arith.cmpi ne, %1, %c0_i32_0 : i32
    scf.if %2 {
      %cst_10 = arith.constant 0.000000e+00 : f32
      %14 = vector.broadcast %cst_10 : f32 to vector<16x128xf32>
      %c0_11 = arith.constant 0 : index
      %c0_12 = arith.constant 0 : index
      %15 = vector.load %arg5[%c0_11, %c0_12] : memref<16x128xf32, #tpu.memory_space<vmem>>, vector<16x128xf32>
      tpu.vector_store %arg5[%c0_11, %c0_12], %14 {strides = array<i32>} : memref<16x128xf32, #tpu.memory_space<vmem>>, vector<16x128xf32>,
    } else {
    }
    %c0 = arith.constant 0 : index
    %c0_1 = arith.constant 0 : index
    %3 = vector.load %arg2[%c0, %c0_1] : memref<16x128xf32, #tpu.memory_space<vmem>>, vector<16x128xf32>
    %c0_2 = arith.constant 0 : index
    %c0_3 = arith.constant 0 : index
    %4 = vector.load %arg3[%c0_2, %c0_3] : memref<16x128xf32, #tpu.memory_space<vmem>>, vector<16x128xf32>
    %5 = arith.mulf %3, %4 : vector<16x128xf32>
    %c0_4 = arith.constant 0 : index
    %c0_5 = arith.constant 0 : index
    %6 = vector.load %arg5[%c0_4, %c0_5] : memref<16x128xf32, #tpu.memory_space<vmem>>, vector<16x128xf32>
    %7 = vector.shape_cast %5 : vector<16x128xf32> to vector<1x16x128xf32>
    %cst = arith.constant dense<0.000000e+00> : vector<16x128xf32>
    %8 = vector.multi_reduction <add>, %7, %cst [0] : vector<1x16x128xf32> to vector<16x128xf32>
    %9 = arith.addf %6, %8 : vector<16x128xf32>
    %c0_6 = arith.constant 0 : index
    %c0_7 = arith.constant 0 : index
    %10 = vector.load %arg5[%c0_6, %c0_7] : memref<16x128xf32, #tpu.memory_space<vmem>>, vector<16x128xf32>
    tpu.vector_store %arg5[%c0_6, %c0_7], %9 {strides = array<i32>} : memref<16x128xf32, #tpu.memory_space<vmem>>, vector<16x128xf32>,
    %c0_i32_8 = arith.constant 0 : i32
    %11 = arith.cmpi eq, %arg1, %c0_i32_8 : i32
    %12 = arith.extui %11 : i1 to i32
    %c0_i32_9 = arith.constant 0 : i32
    %13 = arith.cmpi ne, %12, %c0_i32_9 : i32
    scf.if %13 {
      %c0_10 = arith.constant 0 : index
      %c0_11 = arith.constant 0 : index
      %14 = vector.load %arg5[%c0_10, %c0_11] : memref<16x128xf32, #tpu.memory_space<vmem>>, vector<16x128xf32>
      %15 = vector.shape_cast %14 : vector<16x128xf32> to vector<1x16x128xf32>
      %cst_12 = arith.constant dense<0.000000e+00> : vector<1xf32>
      %16 = vector.multi_reduction <add>, %15, %cst_12 [1, 2] : vector<1x16x128xf32> to vector<1xf32>
      %17 = vector.shape_cast %16 : vector<1xf32> to vector<1x1x1xf32>
      %18 = vector.extract %17[0, 0, 0] : f32 from vector<1x1x1xf32>
      %c0_13 = arith.constant 0 : index
      %c0_14 = arith.constant 0 : index
      %19 = memref.load %arg4[%c0_13, %c0_14] : memref<1x1xf32, #tpu.memory_space<smem>>
      memref.store %18, %arg4[%c0_13, %c0_14] : memref<1x1xf32, #tpu.memory_space<smem>>
    } else {
    }
    return
  }
  func.func @transform_0(%arg0: i32, %arg1: i32) -> (i32, i32) {
    %c1_i32 = arith.constant 1 : i32
    %0 = arith.muli %arg0, %c1_i32 : i32
    %1 = arith.addi %0, %arg1 : i32
    %c0_i32 = arith.constant 0 : i32
    %c0_i32_0 = arith.constant 0 : i32
    return %1, %c0_i32 : i32, i32
  }
  func.func @transform_1(%arg0: i32, %arg1: i32) -> (i32, i32) {
    %c1_i32 = arith.constant 1 : i32
    %0 = arith.muli %arg0, %c1_i32 : i32
    %1 = arith.addi %0, %arg1 : i32
    %c0_i32 = arith.constant 0 : i32
    %c0_i32_0 = arith.constant 0 : i32
    return %1, %c0_i32 : i32, i32
  }
  func.func @transform_2(%arg0: i32, %arg1: i32) -> (i32, i32) {
    %c0_i32 = arith.constant 0 : i32
    %c0_i32_0 = arith.constant 0 : i32
    return %arg0, %c0_i32 : i32, i32
  }
}

</mosaic_0001>

<llo_original>
// kernel: tpu_custom_call.1
$region0: #{tpu_custom_call.1}
  #allocation0 [shape = 'u32[]', space=smem, size = 0x4, offset = 0x4, fixed_abs, tag = 'smem constant byte address 0x4 - core index']
  #allocation1 [shape = 'u32[72,128]{1,0:T(1,128)}', space=vmem, size = 0x9000, scoped, tag = 'internal scratch']
  #allocation2 [shape = 'f32[16,128]{1,0:T(8,128)}', space=vmem, size = 0x2000, scoped, tag = 'scratch operand']
  %s0 = inlined_call_operand.hbm [shape: f32[16,128], index: 0, kind: input, shape index: {}]
  %s1 = inlined_call_operand.hbm [shape: f32[16,128], index: 1, kind: input, shape index: {}]
  %s2 = inlined_call_operand.hbm [shape: f32[1,1], index: 2, kind: output, shape index: {}]
  %s3 = sld [smem:[#allocation0]]
  $region34: #{tpu_custom_call.1} parent=0
    _
  %s5 = ssub.s32 1, %s3
  %s6 = scalar_select 0, %s5, %s3
  $region1: #{tpu_custom_call.1} parent=0
    #allocation3 [shape = 'u8[8192]{0}', space=vmem, size = 0x2000, scoped, tag = 'input window, operand 0, single buffered']
    #allocation4 [shape = 's32[1]{0}', space=sflag, size = 0x4, scoped, tag = 'scoped memory for tpu_custom_call.1']
    #allocation5 [shape = 's32[1]{0}', space=sflag, size = 0x4, scoped, tag = 'scoped memory for tpu_custom_call.1']
    #allocation6 [shape = 'u8[8192]{0}', space=vmem, size = 0x2000, scoped, tag = 'input window, operand 1, single buffered']
    #allocation7 [shape = 's32[1]{0}', space=sflag, size = 0x4, scoped, tag = 'scoped memory for tpu_custom_call.1']
    #allocation8 [shape = 'u8[512]{0}', space=smem, size = 0x200, scoped, tag = 'output window, operand 0, single buffered']
    %7 = vsyncpa [#allocation4], 0
    %8 = vsyncpa [#allocation7], 0
    %9 = vsyncpa [#allocation5], 0
    // Predicated region
    $region2: #{tpu_custom_call.1} parent=1 // pred_check
      _
    $region3: #{tpu_custom_call.1} parent=1 // pred_check_branch
      %11 = sbr.rel (0) target = $region5
    $region4: #{tpu_custom_call.1} parent=1 // pred_region
      %s12 = sadd.s32 0, 0
      %s13 = smul.u32 2, %s12
      %15 = vsyncadd [#allocation4], 0
      %s16 = smul.addr %s13, 8
      %s17 = scalar_lea.hbm %s0, %s16
      %s18 = sshll.u32 %s17, 4
      %s19 = int_to_ptr.hbm [resolvable:$true] %s18
      %s20 = sshll.u32 [#allocation3], 4
      %s21 = int_to_ptr.vmem [resolvable:$true] %s20
      %26 = dma.hbm_to_vmem [thread:$0]  %s19, 256, %s21, [#allocation4], 128, 128, 8
    $region5: #{tpu_custom_call.1} parent=1 // pred_fallthru
      _
    // Predicated region
    $region6: #{tpu_custom_call.1} parent=1 // pred_check
      _
    $region7: #{tpu_custom_call.1} parent=1 // pred_check_branch
      %28 = sbr.rel (0) target = $region9
    $region8: #{tpu_custom_call.1} parent=1 // pred_region
      %s29 = sadd.s32 0, 0
      %s30 = smul.u32 2, %s29
      %32 = vsyncadd [#allocation7], 0
      %s33 = smul.addr %s30, 8
      %s34 = scalar_lea.hbm %s1, %s33
      %s35 = sshll.u32 %s34, 4
      %s36 = int_to_ptr.hbm [resolvable:$true] %s35
      %s37 = sshll.u32 [#allocation6], 4
      %s38 = int_to_ptr.vmem [resolvable:$true] %s37
      %43 = dma.hbm_to_vmem [thread:$0]  %s36, 256, %s38, [#allocation7], 128, 128, 8
    $region9: #{tpu_custom_call.1} parent=1 // pred_fallthru
      _
    // Predicated region
    $region10: #{tpu_custom_call.1} parent=1 // pred_check
      _
    $region11: #{tpu_custom_call.1} parent=1 // pred_check_branch
      %45 = sbr.rel (0) target = $region13
    $region12: #{tpu_custom_call.1} parent=1 // pred_region
      %47 = dma.done [#allocation4], 256
    $region13: #{tpu_custom_call.1} parent=1 // pred_fallthru
      _
    // Predicated region
    $region14: #{tpu_custom_call.1} parent=1 // pred_check
      _
    $region15: #{tpu_custom_call.1} parent=1 // pred_check_branch
      %49 = sbr.rel (0) target = $region17
    $region16: #{tpu_custom_call.1} parent=1 // pred_region
      %51 = dma.done [#allocation7], 256
    $region17: #{tpu_custom_call.1} parent=1 // pred_fallthru
      _
    %s52 = sadd.s32 0, 0
    %s53 = smul.u32 2, %s52
    %s54 = sadd.s32 0, 0
    %s55 = smul.u32 2, %s54
    %p56 = scmp.eq.s32.totalorder 0, 0
    // Predicated region
    $region18: #{tpu_custom_call.1} parent=1 // pred_check
      %p57 = pneg %p56
    $region19: #{tpu_custom_call.1} parent=1 // pred_check_branch
      %59 = sbr.rel (%p57) target = $region21
    $region20: #{tpu_custom_call.1} parent=1 // pred_region
      %60 = vst [vmem:[#allocation2] sm:$0xff] 0.0
      %61 = vst [vmem:[#allocation2 + $0x8] sm:$0xff] 0.0
    $region21: #{tpu_custom_call.1} parent=1 // pred_fallthru
      _
    %v62 = vld [vmem:[#allocation3] sm:$0xff]
    %v63 = vld [vmem:[#allocation3 + $0x8] sm:$0xff]
    %v64 = vld [vmem:[#allocation6] sm:$0xff]
    %v65 = vld [vmem:[#allocation6 + $0x8] sm:$0xff]
    %v66 = vmul.f32 %v62, %v64
    %v67 = vmul.f32 %v63, %v65
    %v68 = vld [vmem:[#allocation2] sm:$0xff]
    %v69 = vld [vmem:[#allocation2 + $0x8] sm:$0xff]
    %v70 = vadd.f32 %v66, 0.0
    %v71 = vadd.f32 %v67, 0.0
    %v72 = vadd.f32 %v68, %v70
    %v73 = vadd.f32 %v69, %v71
    %74 = vst [vmem:[#allocation2] sm:$0xff] %v72
    %75 = vst [vmem:[#allocation2 + $0x8] sm:$0xff] %v73
    // Predicated region
    $region22: #{tpu_custom_call.1} parent=1 // pred_check
      %p76 = pneg %p56
    $region23: #{tpu_custom_call.1} parent=1 // pred_check_branch
      %78 = sbr.rel (%p76) target = $region25
    $region24: #{tpu_custom_call.1} parent=1 // pred_region
      %v79 = vld [vmem:[#allocation2] sm:$0xff]
      %v80 = vld [vmem:[#allocation2 + $0x8] sm:$0xff]
      %v81 = vadd.f32 %v79, %v80
      %82 = vadd.xlane.f32.xlu0 %v81
      %v83 = vpop.xlane.xlu0 %82
      %v84 = vrot.slane %v83, 4
      %v85 = vadd.f32 %v83, %v84
      %v86 = vrot.slane %v85, 2
      %v87 = vadd.f32 %v85, %v86
      %v88 = vrot.slane %v87, 1
      %v89 = vadd.f32 %v87, %v88
      %s90 = vtos %v89
      %s91 = scalar_lea.smem [#allocation8], 0
      %92 = sst [smem:[%s91]] %s90
    $region25: #{tpu_custom_call.1} parent=1 // pred_fallthru
      _
    // Predicated region
    $region26: #{tpu_custom_call.1} parent=1 // pred_check
      _
    $region27: #{tpu_custom_call.1} parent=1 // pred_check_branch
      %94 = sbr.rel (0) target = $region29
    $region28: #{tpu_custom_call.1} parent=1 // pred_region
      %96 = vsyncadd [#allocation5], 0
      %s98 = sshll.u32 %s2, 4
      %s99 = int_to_ptr.hbm [resolvable:$true] %s98
      %101 = dma.smem_to_hbm [#allocation8], 16, %s99, [#allocation5]
    $region29: #{tpu_custom_call.1} parent=1 // pred_fallthru
      _
    // Predicated region
    $region30: #{tpu_custom_call.1} parent=1 // pred_check
      _
    $region31: #{tpu_custom_call.1} parent=1 // pred_check_branch
      %103 = sbr.rel (0) target = $region33
    $region32: #{tpu_custom_call.1} parent=1 // pred_region
      %105 = dma.done [#allocation5], 16
    $region33: #{tpu_custom_call.1} parent=1 // pred_fallthru
      _
    %106 = sfence
    %107 = vsyncpa [#allocation4], 1
    %108 = vsyncpa [#allocation7], 1
    %109 = vsyncpa [#allocation5], 1

</llo_original>
